<compile_context>
chip_gen: v6e
topology: v6e:2x2x1
jax: 0.10.0
libtpu: 0.0.40
codegen_flags: <defaults>
</compile_context>

<pallas_src>
import jax
import jax.numpy as jnp
from jax.experimental import pallas as pl
from jax.experimental.pallas import tpu as pltpu

EMB_DIM = 30          # matches `emb_dim = 30` in the reference script
_ROW_ALIGN = 16       # sublane alignment valid for both bf16 and f32 tiles
_MIB = 1024 * 1024


def _round_up(x, m):
    return ((x + m - 1) // m) * m


def _cdiv(a, b):
    return -(-a // b)


def _vmem_budget_bytes():
    """(tiling budget, vmem_limit_bytes) sized per chip generation."""
    try:
        cap = getattr(pltpu.get_tpu_info(), "vmem_capacity_bytes", 0) or 0
    except Exception:  # interpret mode / query unavailable -> conservative
        cap = 0
    if cap >= 128 * _MIB:        # v5e / v6e: 128 MiB physical VMEM
        return 80 * _MIB, 100 * _MIB
    if cap >= 48 * _MIB:         # v7x: 64 MiB physical per TensorCore
        return 40 * _MIB, 48 * _MIB
    return 24 * _MIB, 32 * _MIB  # unknown -> previous safe defaults


def _fc_softmax_kernel(z_ref, w_ref, b_ref, o_ref):
    # z_ref: (block_rows, k_pad)   w_ref: (k_pad, n_pad)   (compute dtype, e.g. bf16)
    # b_ref: (1, n_pad) f32        o_ref: (block_rows, n_pad) out dtype
    logits = jnp.dot(z_ref[...], w_ref[...],
                     preferred_element_type=jnp.float32) + b_ref[...]
    m = jnp.max(logits, axis=-1, keepdims=True)
    # TODO(synk): if profiling shows the EUP saturating on v6e/v7x after the memory
    # fixes, compute exp in bf16 (keep max-subtraction / sum in f32); not on v5e.
    e = jnp.exp(logits - m)                         # padded cols: exp(-1e30 - m) == 0
    denom = jnp.sum(e, axis=-1, keepdims=True)
    inv = pl.reciprocal(denom)                      # exact; (rows, 1) -> cost is noise
    o_ref[...] = (e * inv).astype(o_ref.dtype)


def _choose_block_rows(n_rows, k_pad, n_pad, in_bytes, out_bytes, vmem_budget):
    """Row tile: as large as the VMEM budget allows, but with >=2 grid tiles when
    possible (megacore) and only ~_ROW_ALIGN rows of padding waste overall."""
    n_al = _round_up(max(n_rows, 1), _ROW_ALIGN)
    # Resident, single-buffered (pl.Buffered(1)) weight + bias (bias sublane-rounded).
    fixed = k_pad * n_pad * in_bytes + 8 * n_pad * 4
    # Per-row: double-buffered z + out tiles plus ~3 f32 temporaries of width n_pad.
    per_row = (k_pad * in_bytes * 2) + (n_pad * out_bytes * 2) + (n_pad * 4 * 3)
    avail = max(vmem_budget - fixed, per_row * _ROW_ALIGN)
    br_max = max(_ROW_ALIGN,
                 min(1024, (avail // per_row) // _ROW_ALIGN * _ROW_ALIGN))
    # >=2 tiles so both v7x TensorCores get work; >=4 for large batches.
    min_tiles = 1
    if n_al >= 2 * _ROW_ALIGN:
        min_tiles = 2
    if n_al >= 4096:
        min_tiles = 4
    num_tiles = max(_cdiv(n_al, br_max), min_tiles)
    return int(_round_up(_cdiv(n_al, num_tiles), _ROW_ALIGN))


def fc_softmax(z, w_t, b, n_out, *, out_dtype=jnp.float32, block_rows=None,
               return_padded=False):
    """Fused Linear + Softmax(-1).

    z   : (n, k_pad)      rows of zero-K-padded embeddings (compute dtype, e.g. bf16)
    w_t : (k_pad, n_pad)  pre-transposed, lane-padded weight (pad cols = 0), same dtype
    b   : (1, n_pad) f32  bias, padded cols = -1e30 (so their softmax prob is 0)

    Returns (n, n_out) probabilities; with return_padded=True, returns the raw
    (n_rows, n_pad) block (padded cols are exactly 0; rows >= n are junk).
    """
    n, k_pad = z.shape
    k_w, n_pad = w_t.shape
    assert k_w == k_pad and n_pad % 128 == 0 and b.shape == (1, n_pad)

    in_bytes = jnp.dtype(z.dtype).itemsize
    out_bytes = jnp.dtype(out_dtype).itemsize
    vmem_budget, vmem_limit = _vmem_budget_bytes()
    if block_rows is None:
        block_rows = _choose_block_rows(n, k_pad, n_pad, in_bytes, out_bytes,
                                        vmem_budget)

    pad = (-n) % block_rows
    if pad:
        z = jnp.pad(z, ((0, pad), (0, 0)))
    n_rows = z.shape[0]

    # TODO(synk): once k_pad * n_pad * in_bytes stops fitting comfortably in VMEM
    # (huge n_tag, first on v7x's 64 MiB), add a second "arbitrary" grid axis over
    # n_pad with a two-pass / online softmax scratch instead of the resident weight.
    out = pl.pallas_call(
        _fc_softmax_kernel,
        out_shape=jax.ShapeDtypeStruct((n_rows, n_pad), out_dtype),
        grid_spec=pltpu.PrefetchScalarGridSpec(
            num_scalar_prefetch=0,
            grid=(n_rows // block_rows,),
            in_specs=[
                pl.BlockSpec((block_rows, k_pad), lambda i: (i, 0)),
                # Constant index_map -> single resident buffer, no double-buffering.
                pl.BlockSpec((k_pad, n_pad), lambda i: (0, 0),
                             pipeline_mode=pl.Buffered(1)),
                pl.BlockSpec((1, n_pad), lambda i: (0, 0),
                             pipeline_mode=pl.Buffered(1)),
            ],
            out_specs=pl.BlockSpec((block_rows, n_pad), lambda i: (i, 0)),
        ),
        compiler_params=pltpu.CompilerParams(
            dimension_semantics=("parallel",),       # row tiles shard across TCs (v7x)
            vmem_limit_bytes=vmem_limit,             # chip-aware scoped VMEM limit
        ),
    )(z, w_t, b)

    if return_padded:
        return out
    if n_rows != n or n_pad != n_out:
        # Pay the slice copy only when padding actually happened; callers that can
        # consume the padded layout should use return_padded=True instead.
        out = out[:n, :n_out]
    return out


class SkipGramSplit:
    """JAX/Pallas port of the PyTorch `skip_gram_split` module.

    Parameters are initialised in f32 (matching nn.Embedding / nn.Linear defaults);
    padded bf16 copies feed the kernel (the MXU is natively bf16; f32 matmuls are
    emulated with multiple passes).  Pass compute_dtype=jnp.float32 for exactness.
    """

    def __init__(self, n_tag, n_ques, emb_dim, key,
                 compute_dtype=jnp.bfloat16, out_dtype=jnp.float32):
        k1, k2, k3, k4 = jax.random.split(key, 4)
        self.n_tag = n_tag
        self.emb_dim = emb_dim
        self.out_dtype = out_dtype
        self.k_pad = _round_up(emb_dim, 8)      # 30 -> 32, sublane aligned
        self.n_pad = _round_up(n_tag, 128)      # lane-dense output width

        # nn.Embedding default init ~ N(0, 1)
        self.tag_embs = jax.random.normal(k1, (n_tag, emb_dim), jnp.float32)
        self.ques_embs = jax.random.normal(k2, (n_ques, emb_dim), jnp.float32)
        # nn.Linear default init ~ U(-1/sqrt(fan_in), 1/sqrt(fan_in))
        bound = 1.0 / (emb_dim ** 0.5)
        self.fc_w = jax.random.uniform(k3, (n_tag, emb_dim), jnp.float32, -bound, bound)
        self.fc_b = jax.random.uniform(k4, (n_tag,), jnp.float32, -bound, bound)

        # One-time padded / transposed / compute-dtype copies used by the kernel.
        dk = self.k_pad - emb_dim
        dn = self.n_pad - n_tag
        self.tag_embs_pad = jnp.pad(self.tag_embs, ((0, 0), (0, dk))).astype(compute_dtype)
        self.ques_embs_pad = jnp.pad(self.ques_embs, ((0, 0), (0, dk))).astype(compute_dtype)
        w_t = jnp.pad(self.fc_w, ((0, 0), (0, dk))).T                  # (k_pad, n_tag)
        self.fc_wT_pad = jnp.pad(w_t, ((0, 0), (0, dn))).astype(compute_dtype)
        self.fc_b_pad = jnp.pad(self.fc_b.reshape(1, n_tag), ((0, 0), (0, dn)),
                                constant_values=-1e30)                 # f32, pad -> -inf-ish

    def __call__(self, tag_ids, ques_ids):
        # TODO(synk): fuse these gathers + the concat into the kernel via
        # PrefetchScalarGridSpec(num_scalar_prefetch>=1) + pl.Element row gather
        # (removes two XLA gather kernels and the materialised concat).
        # NOTE: jnp.take clamps out-of-range ids instead of raising like nn.Embedding.
        tag_z = jnp.take(self.tag_embs_pad, tag_ids, axis=0)
        ques_z = jnp.take(self.ques_embs_pad, ques_ids - self.n_tag, axis=0)
        z = jnp.concatenate([tag_z, ques_z], axis=0)                   # (rows, k_pad)
        return fc_softmax(z, self.fc_wT_pad, self.fc_b_pad, self.n_tag,
                          out_dtype=self.out_dtype)


if __name__ == "__main__":
    n_tag, n_ques = 16, 32
    key = jax.random.PRNGKey(0)
    k_model, k_tag, k_ques = jax.random.split(key, 3)

    model = SkipGramSplit(n_tag, n_ques, EMB_DIM, k_model)

    tag_ids = jax.random.randint(k_tag, (8,), 0, n_tag, dtype=jnp.int32)
    ques_ids = jax.random.randint(k_ques, (8,), n_tag, n_tag + n_ques, dtype=jnp.int32)

    out = model(tag_ids, ques_ids)
    out = jax.block_until_ready(out)
    assert out.shape == (16, n_tag)

    # Reference 1: pure-JAX forward using the same bf16-quantised parameters cast
    # back to f32 (isolates the kernel math from the intentional bf16 cast).
    tag_z = jnp.take(model.tag_embs_pad.astype(jnp.float32), tag_ids, axis=0)[:, :EMB_DIM]
    ques_z = jnp.take(model.ques_embs_pad.astype(jnp.float32),
                      ques_ids - n_tag, axis=0)[:, :EMB_DIM]
    z_q = jnp.concatenate([tag_z, ques_z], axis=0)
    w_q = model.fc_wT_pad.astype(jnp.float32)[:EMB_DIM, :n_tag]
    ref_q = jax.nn.softmax(z_q @ w_q + model.fc_b, axis=-1)
    assert jnp.allclose(out, ref_q, rtol=2e-2, atol=2e-3)
    # Exact reciprocal -> rows sum to 1 tightly.
    assert jnp.allclose(jnp.sum(out, axis=-1), 1.0, atol=1e-3)

    # Reference 2: full-f32 forward (PyTorch-equivalent); deviation is only the
    # bf16 parameter quantisation.
    z_f = jnp.concatenate([jnp.take(model.tag_embs, tag_ids, axis=0),
                           jnp.take(model.ques_embs, ques_ids - n_tag, axis=0)], axis=0)
    ref_f32 = jax.nn.softmax(z_f @ model.fc_w.T + model.fc_b, axis=-1)
    assert jnp.allclose(out, ref_f32, rtol=5e-2, atol=2e-2)

    print("KERNEL_OK")
</pallas_src>

<mosaic_0001>
module attributes {stable_mosaic.version = 11 : i64} {
  func.func @_fc_softmax_kernel(%arg0: i32, %arg1: memref<16x32xbf16, #tpu.memory_space<vmem>>, %arg2: memref<32x128xbf16, #tpu.memory_space<vmem>>, %arg3: memref<1x128xf32, #tpu.memory_space<vmem>>, %arg4: memref<16x128xf32, #tpu.memory_space<vmem>>) attributes {dimension_semantics = [#tpu.dimension_semantics<parallel>], iteration_bounds = array<i64: 1>, scalar_prefetch = 0 : i64, scratch_operands = 0 : i64, tpu.core_type = #tpu.core_type<tc>, window_params = [{transform_indices = @transform_0, window_bounds = array<i64: 16, 32>}, {pipeline_mode = #tpu.pipeline_mode<synchronous>, transform_indices = @transform_1, window_bounds = array<i64: 32, 128>}, {pipeline_mode = #tpu.pipeline_mode<synchronous>, transform_indices = @transform_2, window_bounds = array<i64: 1, 128>}, {transform_indices = @transform_3, window_bounds = array<i64: 16, 128>}]} {
    %c0 = arith.constant 0 : index
    %c0_0 = arith.constant 0 : index
    %0 = vector.load %arg1[%c0, %c0_0] : memref<16x32xbf16, #tpu.memory_space<vmem>>, vector<16x32xbf16>
    %c0_1 = arith.constant 0 : index
    %c0_2 = arith.constant 0 : index
    %1 = vector.load %arg2[%c0_1, %c0_2] : memref<32x128xbf16, #tpu.memory_space<vmem>>, vector<32x128xbf16>
    %cst = arith.constant dense<0.000000e+00> : vector<16x128xf32>
    %2 = tpu.matmul %0, %1, %cst {dimension_numbers = #tpu.dot_dimension_numbers<[1], [0], [0], [1], [0, 0, 1, 1], [], []>} : vector<16x32xbf16>, vector<32x128xbf16>, vector<16x128xf32> -> vector<16x128xf32>
    %c0_3 = arith.constant 0 : index
    %c0_4 = arith.constant 0 : index
    %3 = vector.load %arg3[%c0_3, %c0_4] : memref<1x128xf32, #tpu.memory_space<vmem>>, vector<1x128xf32>
    %4 = vector.broadcast %3 : vector<1x128xf32> to vector<16x128xf32>
    %5 = arith.addf %2, %4 : vector<16x128xf32>
    %cst_5 = arith.constant dense<0xFF800000> : vector<16xf32>
    %6 = vector.multi_reduction <maximumf>, %5, %cst_5 [1] : vector<16x128xf32> to vector<16xf32>
    %7 = vector.shape_cast %6 : vector<16xf32> to vector<16x1xf32>
    %8 = vector.broadcast %7 : vector<16x1xf32> to vector<16x128xf32>
    %9 = arith.subf %5, %8 : vector<16x128xf32>
    %10 = math.exp %9 : vector<16x128xf32>
    %cst_6 = arith.constant dense<0.000000e+00> : vector<16xf32>
    %11 = vector.multi_reduction <add>, %10, %cst_6 [1] : vector<16x128xf32> to vector<16xf32>
    %12 = vector.shape_cast %11 : vector<16xf32> to vector<16x1xf32>
    %13 = tpu.reciprocal %12 : vector<16x1xf32> -> vector<16x1xf32>
    %14 = vector.broadcast %13 : vector<16x1xf32> to vector<16x128xf32>
    %15 = arith.mulf %10, %14 : vector<16x128xf32>
    %c0_7 = arith.constant 0 : index
    %c0_8 = arith.constant 0 : index
    %16 = vector.load %arg4[%c0_7, %c0_8] : memref<16x128xf32, #tpu.memory_space<vmem>>, vector<16x128xf32>
    tpu.vector_store %arg4[%c0_7, %c0_8], %15 {strides = array<i32>} : memref<16x128xf32, #tpu.memory_space<vmem>>, vector<16x128xf32>,
    return
  }
  func.func @transform_0(%arg0: i32) -> (i32, i32) {
    %c0_i32 = arith.constant 0 : i32
    %c0_i32_0 = arith.constant 0 : i32
    return %arg0, %c0_i32 : i32, i32
  }
  func.func @transform_1(%arg0: i32) -> (i32, i32) {
    %c0_i32 = arith.constant 0 : i32
    %c0_i32_0 = arith.constant 0 : i32
    %c0_i32_1 = arith.constant 0 : i32
    return %c0_i32, %c0_i32_0 : i32, i32
  }
  func.func @transform_2(%arg0: i32) -> (i32, i32) {
    %c0_i32 = arith.constant 0 : i32
    %c0_i32_0 = arith.constant 0 : i32
    %c0_i32_1 = arith.constant 0 : i32
    return %c0_i32, %c0_i32_0 : i32, i32
  }
  func.func @transform_3(%arg0: i32) -> (i32, i32) {
    %c0_i32 = arith.constant 0 : i32
    %c0_i32_0 = arith.constant 0 : i32
    return %arg0, %c0_i32 : i32, i32
  }
}

</mosaic_0001>

<llo_original>
// kernel: tpu_custom_call.1
$region0: #{tpu_custom_call.1}
  #allocation0 [shape = 'u32[]', space=smem, size = 0x4, offset = 0x4, fixed_abs, tag = 'smem constant byte address 0x4 - core index']
  #allocation1 [shape = 'u32[144,128]{1,0:T(1,128)}', space=vmem, size = 0x12000, scoped, tag = 'internal scratch']
  %s0 = inlined_call_operand.hbm [shape: bf16[16,32], index: 0, kind: input, shape index: {}]
  %s1 = inlined_call_operand.hbm [shape: bf16[32,128], index: 1, kind: input, shape index: {}]
  %s2 = inlined_call_operand.vmem [shape: f32[1,128], index: 2, kind: input, shape index: {}]
  %s3 = inlined_call_operand.hbm [shape: f32[16,128], index: 3, kind: output, shape index: {}]
  %s4 = sld [smem:[#allocation0]]
  $region30: #{tpu_custom_call.1} parent=0
    _
  %s6 = ssub.s32 1, %s4
  %s7 = scalar_select 0, %s6, %s4
  $region1: #{tpu_custom_call.1} parent=0
    #allocation2 [shape = 'u8[4096]{0}', space=vmem, size = 0x1000, scoped, tag = 'input window, operand 0, single buffered']
    #allocation3 [shape = 's32[1]{0}', space=sflag, size = 0x4, scoped, tag = 'scoped memory for tpu_custom_call.1']
    #allocation4 [shape = 's32[1]{0}', space=sflag, size = 0x4, scoped, tag = 'scoped memory for tpu_custom_call.1']
    #allocation5 [shape = 'u8[8192]{0}', space=vmem, size = 0x2000, scoped, tag = 'input window, operand 1, single buffered']
    #allocation6 [shape = 's32[1]{0}', space=sflag, size = 0x4, scoped, tag = 'scoped memory for tpu_custom_call.1']
    #allocation7 [shape = 'u8[8192]{0}', space=vmem, size = 0x2000, scoped, tag = 'output window, operand 0, single buffered']
    %8 = vsyncpa [#allocation3], 0
    %9 = vsyncpa [#allocation6], 0
    %10 = vsyncpa [#allocation4], 0
    // Predicated region
    $region2: #{tpu_custom_call.1} parent=1 // pred_check
      _
    $region3: #{tpu_custom_call.1} parent=1 // pred_check_branch
      %12 = sbr.rel (0) target = $region5
    $region4: #{tpu_custom_call.1} parent=1 // pred_region
      %s14 = ssub.s32 128, 128
      %15 = vsyncadd [#allocation3], %s14
      %s16 = sshll.u32 [#allocation2], 4
      %s17 = int_to_ptr.vmem [resolvable:$true] %s16
      %22 = dma.hbm_to_vmem [thread:$0]  %s0, 128, %s17, [#allocation3], 64, 64, 4
    $region5: #{tpu_custom_call.1} parent=1 // pred_fallthru
      _
    // Predicated region
    $region6: #{tpu_custom_call.1} parent=1 // pred_check
      _
    $region7: #{tpu_custom_call.1} parent=1 // pred_check_branch
      %24 = sbr.rel (0) target = $region9
    $region8: #{tpu_custom_call.1} parent=1 // pred_region
      %s26 = ssub.s32 256, 256
      %27 = vsyncadd [#allocation6], %s26
      %s28 = sshll.u32 [#allocation5], 4
      %s29 = int_to_ptr.vmem [resolvable:$true] %s28
      %34 = dma.hbm_to_vmem [thread:$0]  %s1, 256, %s29, [#allocation6], 64, 64, 4
    $region9: #{tpu_custom_call.1} parent=1 // pred_fallthru
      _
    // Predicated region
    $region10: #{tpu_custom_call.1} parent=1 // pred_check
      _
    $region11: #{tpu_custom_call.1} parent=1 // pred_check_branch
      %36 = sbr.rel (0) target = $region13
    $region12: #{tpu_custom_call.1} parent=1 // pred_region
      _
    $region13: #{tpu_custom_call.1} parent=1 // pred_fallthru
      _
    // Predicated region
    $region14: #{tpu_custom_call.1} parent=1 // pred_check
      _
    $region15: #{tpu_custom_call.1} parent=1 // pred_check_branch
      %38 = sbr.rel (0) target = $region17
    $region16: #{tpu_custom_call.1} parent=1 // pred_region
      %39 = dma.done [#allocation3], 128
    $region17: #{tpu_custom_call.1} parent=1 // pred_fallthru
      _
    // Predicated region
    $region18: #{tpu_custom_call.1} parent=1 // pred_check
      _
    $region19: #{tpu_custom_call.1} parent=1 // pred_check_branch
      %41 = sbr.rel (0) target = $region21
    $region20: #{tpu_custom_call.1} parent=1 // pred_region
      %42 = dma.done [#allocation6], 256
    $region21: #{tpu_custom_call.1} parent=1 // pred_fallthru
      _
    %v44 = vld [vmem:[#allocation2] sm:$0xf]
    %v45 = vld [vmem:[#allocation2 + $0x4] sm:$0xf]
    %v46 = vld [vmem:[#allocation5] sm:$0xf]
    %v47 = vld [vmem:[#allocation5 + $0x4] sm:$0xf]
    %v48 = vld [vmem:[#allocation5 + $0x8] sm:$0xf]
    %v49 = vld [vmem:[#allocation5 + $0xc] sm:$0xf]
    %v50 = vld [vmem:[%s2] sm:$0x1]
    %v52 = vlaneseq
    %v53 = vshrl.u32 %v52, 7
    %v54 = vsub.s32 0, %v53
    %v55 = vrot.slane %v50, %v54
    %v59 = vunpack.c.l.b16 %v44
    %v60 = vunpack.c.l.b16 %v45
    %v61 = vpack.c.b16 %v60, %v59
    %v66 = vunpack.c.l.b16 %v46
    %v67 = vunpack.c.l.b16 %v47
    %v68 = vunpack.c.l.b16 %v48
    %v69 = vunpack.c.l.b16 %v49
    %v70 = vpack.c.b16 %v67, %v66
    %v71 = vpack.c.b16 %v69, %v68
    %vm74 = vcmask 261120
    %v76 = vsel %vm74, %v61, 0
    %78 = vmatprep.subr.bf16.mxu0 0
    %79 = vmatpush1.bf16.msra.mxu0 0
    %80 = vmatprep.subr.bf16.mxu0 0
    %81 = vmatpush1.bf16.msra.mxu0 0
    %82 = vmatprep.subr.bf16.mxu0 0
    %83 = vmatpush1.bf16.msra.mxu0 0
    %84 = vmatprep.subr.bf16.mxu0 0
    %85 = vmatpush1.bf16.msra.mxu0 0
    %86 = vmatprep.subr.bf16.mxu0 0
    %87 = vmatpush1.bf16.msra.mxu0 0
    %88 = vmatprep.subr.bf16.mxu0 0
    %89 = vmatpush1.bf16.msra.mxu0 0
    %90 = vmatprep.subr.bf16.mxu0 0
    %91 = vmatpush1.bf16.msra.mxu0 %v71
    %92 = vmatprep.subr.bf16.mxu0 0
    %93 = vmatpush1.bf16.msra.mxu0 %v70
    %94 = vmatprep.subr.bf16.mxu0 0
    %95 = vmatpush2.bf16.msra.mxu0 0
    %96 = vmatprep.subr.bf16.mxu0 0
    %97 = vmatpush2.bf16.msra.mxu0 0
    %98 = vmatprep.subr.bf16.mxu0 0
    %99 = vmatpush2.bf16.msra.mxu0 0
    %100 = vmatprep.subr.bf16.mxu0 0
    %101 = vmatpush2.bf16.msra.mxu0 0
    %102 = vmatprep.subr.bf16.mxu0 0
    %103 = vmatpush2.bf16.msra.mxu0 0
    %104 = vmatprep.subr.bf16.mxu0 0
    %105 = vmatpush2.bf16.msra.mxu0 0
    %106 = vmatprep.subr.bf16.mxu0 0
    %107 = vmatpush2.bf16.msra.mxu0 0
    %108 = vmatprep.subr.bf16.mxu0 0
    %109 = vmatpush2.bf16.msra.mxu0 0
    %110 = vmatprep.mubr.bf16.mxu0 0
    %111 = vmatmul.mubr.bf16.gmra.mxu0 %v76
    %v112 = vpop.f32.mrf.mxu0
    %v113 = vadd.f32 %v55, %v112
    %v114 = vpop.f32.mrf.mxu0
    %v115 = vpop.f32.mrf.mxu0
    %v116 = vadd.f32 %v55, %v115
    %v117 = vpop.f32.mrf.mxu0
    %118 = vdwg.mxu0
    %119 = vmax.xlane.f32.xlu0 %v113
    %v120 = vpop.xlane.xlu0 %119
    %121 = vmax.xlane.f32.xlu0 %v116
    %v122 = vpop.xlane.xlu0 %121
    %v123 = vsub.f32 %v113, %v120
    %v124 = vsub.f32 %v116, %v122
    %v125 = vmul.f32 %v123, 1.442695
    %v126 = vpow.pop %v125
    %v127 = vmul.f32 %v124, 1.442695
    %v128 = vpow.pop %v127
    %129 = vadd.xlane.f32.xlu0 %v126
    %v130 = vpop.xlane.xlu0 %129
    %131 = vadd.xlane.f32.xlu0 %v128
    %v132 = vpop.xlane.xlu0 %131
    %v133 = vrcp.pop %v130
    %v134 = vrcp.pop %v132
    %v135 = vmul.f32 %v126, %v133
    %v136 = vmul.f32 %v128, %v134
    %137 = vst [vmem:[#allocation7] sm:$0xff] %v135
    %138 = vst [vmem:[#allocation7 + $0x8] sm:$0xff] %v136
    // Predicated region
    $region22: #{tpu_custom_call.1} parent=1 // pred_check
      _
    $region23: #{tpu_custom_call.1} parent=1 // pred_check_branch
      %140 = sbr.rel (0) target = $region25
    $region24: #{tpu_custom_call.1} parent=1 // pred_region
      %s142 = ssub.s32 256, 256
      %143 = vsyncadd [#allocation4], %s142
      %s144 = sshll.u32 [#allocation7], 4
      %s145 = int_to_ptr.vmem [resolvable:$true] %s144
      %150 = dma.vmem_to_hbm [thread:$0]  %s145, 256, %s3, [#allocation4], 128, 128, 8
    $region25: #{tpu_custom_call.1} parent=1 // pred_fallthru
      _
    // Predicated region
    $region26: #{tpu_custom_call.1} parent=1 // pred_check
      _
    $region27: #{tpu_custom_call.1} parent=1 // pred_check_branch
      %152 = sbr.rel (0) target = $region29
    $region28: #{tpu_custom_call.1} parent=1 // pred_region
      %153 = dma.done [#allocation4], 256
    $region29: #{tpu_custom_call.1} parent=1 // pred_fallthru
      _
    %154 = vsyncpa [#allocation3], 1
    %155 = vsyncpa [#allocation6], 1
    %156 = vsyncpa [#allocation4], 1

</llo_original>
